<compile_context>
chip_gen: v7x
topology: tpu7x:2x2x1
jax: 0.10.0
libtpu: 0.0.40
codegen_flags: <defaults>
</compile_context>

<pallas_src>
import jax
import jax.numpy as jnp
from jax.experimental import pallas as pl
from jax.experimental.pallas import tpu as pltpu

_LANES = 128
_SUBLANES = 8
# Rows per grid step for large inputs: 2048 x 128 x 4 B = 1 MiB per buffer.
_MAX_BLOCK_ROWS = 2048


def _identity_kernel(x_ref, o_ref):
    o_ref[...] = x_ref[...]


def _pallas_identity_2d(mat, block_rows):
    rows, lanes = mat.shape
    return pl.pallas_call(
        _identity_kernel,
        out_shape=jax.ShapeDtypeStruct(mat.shape, mat.dtype),
        grid=(rows // block_rows,),
        in_specs=[pl.BlockSpec((block_rows, lanes), lambda i: (i, 0))],
        out_specs=pl.BlockSpec((block_rows, lanes), lambda i: (i, 0)),
        compiler_params=pltpu.CompilerParams(
            dimension_semantics=("parallel",)),
    )(mat)


def pallas_identity(x):
    """Identity via a lane-dense Pallas copy kernel; preserves shape/dtype."""
    n = x.size
    flat = x.reshape(-1)

    # choose rows (multiple of 8) and the per-step block height
    rows = -(-n // _LANES)                                   # ceil(n / 128)
    if rows <= _MAX_BLOCK_ROWS:
        rows = -(-rows // _SUBLANES) * _SUBLANES             # sublane-align
        block_rows = rows                                    # single grid step
    else:
        rows = -(-rows // _MAX_BLOCK_ROWS) * _MAX_BLOCK_ROWS
        block_rows = _MAX_BLOCK_ROWS

    pad = rows * _LANES - n
    mat = jnp.pad(flat, (0, pad)).reshape(rows, _LANES)
    out = _pallas_identity_2d(mat, block_rows)
    return out.reshape(-1)[:n].reshape(x.shape)


class IdentityFirstStage:
    """JAX/Pallas equivalent of the PyTorch IdentityFirstStage module."""

    def __init__(self, *args, vq_interface=False, **kwargs):
        self.vq_interface = vq_interface

    def encode(self, x, *args, **kwargs):
        return x

    def decode(self, x, *args, **kwargs):
        return x

    def quantize(self, x, *args, **kwargs):
        if self.vq_interface:
            return (x, None, [None, None, None])
        return x

    def forward(self, x, *args, **kwargs):
        # Semantically the identity; routed through the Pallas copy kernel.
        return pallas_identity(x)

    __call__ = forward


if __name__ == "__main__":
    key = jax.random.PRNGKey(0)
    x = jax.random.normal(key, (2, 4, 16, 16), dtype=jnp.float32)

    model = IdentityFirstStage(vq_interface=True)
    fwd = jax.jit(model.forward)
    y = fwd(x)
    jax.block_until_ready(y)

    assert y.shape == x.shape and y.dtype == x.dtype
    assert bool(jnp.all(y == x))

    q, q_none, extra = model.quantize(x)
    assert q is x and q_none is None and extra == [None, None, None]
    assert model.encode(x) is x and model.decode(x) is x

    print("KERNEL_OK")
</pallas_src>

<mosaic_0001>
module attributes {stable_mosaic.version = 11 : i64} {
  func.func @_identity_kernel(%arg0: i32, %arg1: memref<16x128xf32, #tpu.memory_space<vmem>>, %arg2: memref<16x128xf32, #tpu.memory_space<vmem>>) attributes {dimension_semantics = [#tpu.dimension_semantics<parallel>], iteration_bounds = array<i64: 1>, scalar_prefetch = 0 : i64, scratch_operands = 0 : i64, tpu.core_type = #tpu.core_type<tc>, window_params = [{transform_indices = @transform_0, window_bounds = array<i64: 16, 128>}, {transform_indices = @transform_1, window_bounds = array<i64: 16, 128>}]} {
    %c0 = arith.constant 0 : index
    %c0_0 = arith.constant 0 : index
    %0 = vector.load %arg1[%c0, %c0_0] : memref<16x128xf32, #tpu.memory_space<vmem>>, vector<16x128xf32>
    %c0_1 = arith.constant 0 : index
    %c0_2 = arith.constant 0 : index
    %1 = vector.load %arg2[%c0_1, %c0_2] : memref<16x128xf32, #tpu.memory_space<vmem>>, vector<16x128xf32>
    tpu.vector_store %arg2[%c0_1, %c0_2], %0 {strides = array<i32>} : memref<16x128xf32, #tpu.memory_space<vmem>>, vector<16x128xf32>,
    return
  }
  func.func @transform_0(%arg0: i32) -> (i32, i32) {
    %c0_i32 = arith.constant 0 : i32
    %c0_i32_0 = arith.constant 0 : i32
    return %arg0, %c0_i32 : i32, i32
  }
  func.func @transform_1(%arg0: i32) -> (i32, i32) {
    %c0_i32 = arith.constant 0 : i32
    %c0_i32_0 = arith.constant 0 : i32
    return %arg0, %c0_i32 : i32, i32
  }
}

</mosaic_0001>

<llo_original>
// kernel: forward.1
$region0: #{forward.1}
  #allocation0 [shape = 'u32[]', space=smem, size = 0x4, offset = 0x4, fixed_abs, tag = 'smem constant byte address 0x4 - core index']
  #allocation1 [shape = 'u32[144,128]{1,0:T(1,128)}', space=vmem, size = 0x12000, scoped, tag = 'internal scratch']
  %s0 = inlined_call_operand.vmem [shape: f32[16,128], index: 0, kind: input, shape index: {}]
  %s1 = inlined_call_operand.vmem [shape: f32[16,128], index: 1, kind: output, shape index: {}]
  %s2 = sld [smem:[#allocation0]]
  $region14: #{forward.1} parent=0
    _
  %s4 = ssub.s32 1, %s2
  %s5 = scalar_select 0, %s4, %s2
  // Predicated region
  $region2: #{forward.1} parent=0 // pred_check
    _
  $region3: #{forward.1} parent=0 // pred_check_branch
    %7 = sbr.rel (0) target = $region5
  $region4: #{forward.1} parent=0 // pred_region
    _
  $region5: #{forward.1} parent=0 // pred_fallthru
    _
  %v8 = vld [vmem:[%s0] sm:$0xff]
  %v9 = vld [vmem:[%s0 + $0x8] sm:$0xff]
  %10 = vst [vmem:[%s1] sm:$0xff] %v8
  %11 = vst [vmem:[%s1 + $0x8] sm:$0xff] %v9
  // Predicated region
  $region6: #{forward.1} parent=0 // pred_check
    _
  $region7: #{forward.1} parent=0 // pred_check_branch
    %13 = sbr.rel (0) target = $region9
  $region8: #{forward.1} parent=0 // pred_region
    _
  $region9: #{forward.1} parent=0 // pred_fallthru
    _
  // Predicated region
  $region10: #{forward.1} parent=0 // pred_check
    _
  $region11: #{forward.1} parent=0 // pred_check_branch
    %15 = sbr.rel (0) target = $region13
  $region12: #{forward.1} parent=0 // pred_region
    _
  $region13: #{forward.1} parent=0 // pred_fallthru
    _

</llo_original>
